<compile_context>
chip_gen: v7x
topology: tpu7x:2x2x1
jax: 0.10.0
libtpu: 0.0.40
codegen_flags: <defaults>
</compile_context>

<pallas_src>
import functools

import jax
import jax.numpy as jnp
from jax.experimental import pallas as pl
from jax.experimental.pallas import tpu as pltpu


def _conv_kernel(x_ref, ghk_ref, bmat_ref, bias_ref, o_ref, *,
                 k, b_blk, h_out, wcin_p, wocout):
    # x_ref:    (B, H, WCin_p)          channel-fastest rows of the raw input (lane-padded)
    # ghk_ref:  (k*B*Ho, B*H)           0/1 selection: H-upsample + reflect pad + kh row-shift,
    #                                   block-diagonal over the B images in this step
    # bmat_ref: (k*WCin_p, Wo*Cout)     W-upsample/pad/tap selection folded with conv weights
    # bias_ref: (1, Wo*Cout)
    # o_ref:    (B, Ho, Wo*Cout)        lane-dense output slab
    b, h, _ = x_ref.shape
    x_flat = x_ref[...].reshape(b * h, wcin_p)                       # (B*H, WCin_p)

    # One selection matmul produces all k row-shifted LHS slabs stacked on rows
    # (row offsets kh*B*Ho are multiples of 8 -> aligned, free views).
    p_all = jnp.dot(ghk_ref[...], x_flat,
                    preferred_element_type=jnp.float32)              # (k*B*Ho, WCin_p)

    m = b_blk * h_out
    acc = jnp.zeros((m, wocout), dtype=jnp.float32)
    for kh in range(k):                                              # k accumulated MXU pushes
        lhs = p_all[kh * m:(kh + 1) * m, :].astype(bmat_ref.dtype)   # (B*Ho, WCin_p) aligned
        rhs = bmat_ref[kh * wcin_p:(kh + 1) * wcin_p, :]             # (WCin_p, Wo*Cout) aligned
        acc = acc + jnp.dot(lhs, rhs, preferred_element_type=jnp.float32)

    acc = acc + bias_ref[...]                                        # broadcast bias row
    o_ref[...] = acc.reshape(b_blk, h_out, wocout).astype(o_ref.dtype)


def _src_idx(padded_len, up_len, pad, u):
    """Padded/upsampled coordinate -> raw-input coordinate (reflect pad + nearest up)."""
    pos = jnp.arange(padded_len) - pad
    pos = jnp.where(pos < 0, -pos, pos)                              # reflect left (no edge repeat)
    pos = jnp.where(pos >= up_len, 2 * (up_len - 1) - pos, pos)      # reflect right
    return pos // u                                                  # nearest-upsample source


def upsample_conv_layer(x_nchw, weight_oikk, bias, *, kernel_size, stride,
                        upsample=None, use_bf16=False, nchw_output=True):
    """Forward pass of UpsampleConvLayer.

    x_nchw:      (N, Cin, H, W)    float32
    weight_oikk: (Cout, Cin, k, k) float32 (PyTorch Conv2d layout)
    bias:        (Cout,)           float32
    returns:     (N, Cout, Ho, Wo) float32  (or (N, Ho, Wo, Cout) if nchw_output=False)
    """
    n, c_in, h, w = x_nchw.shape
    c_out = weight_oikk.shape[0]
    k = kernel_size
    u = int(upsample) if upsample else 1
    pad = k // 2
    hu, wu = h * u, w * u
    hp, wp = hu + 2 * pad, wu + 2 * pad
    h_out = (hp - k) // stride + 1                       # strided conv output size
    w_out = (wp - k) // stride + 1

    wcin = w * c_in
    wcin_p = ((wcin + 127) // 128) * 128                 # lane-dense row width (>=128)
    wocout = w_out * c_out

    # ---- pick how many images share a grid step (fill the MXU M-dim) ----
    target_rows = 256                                    # v6e/v7x MXU rows; >=2x v5e's 128
    want = max(1, target_rows // max(h_out, 1))
    if n >= 2:
        want = min(want, max(1, n // 2))                 # keep >=2 steps for v7x's two TCs
    b_blk = max(1, min(want, n))
    n_pad = ((n + b_blk - 1) // b_blk) * b_blk

    # ---- static selection constants (hoist/cache these when weights are reused) ----
    f32 = jnp.float32
    src_h = _src_idx(hp, hu, pad, u)                     # (Hp,) in [0, H)
    src_w = _src_idx(wp, wu, pad, u)                     # (Wp,) in [0, W)

    # H-direction: for each kh, output row oh selects raw row src_h[oh*stride + kh];
    # block-diagonal over the B images packed into one grid step.
    oh_pos = jnp.arange(h_out)[None, :] * stride + jnp.arange(k)[:, None]      # (k, Ho)
    gh = jax.nn.one_hot(src_h[oh_pos], h, dtype=f32)                            # (k, Ho, H)
    eye_b = jnp.eye(b_blk, dtype=f32)
    ghk = jnp.einsum("bc,koe->kboce", eye_b, gh).reshape(
        k * b_blk * h_out, b_blk * h)                                           # (k*B*Ho, B*H)

    # W-direction upsample/pad/tap selection folded with the conv weights:
    #   bmat[kh][w*Cin + ci, ow*Cout + co] = sum_kw W[co,ci,kh,kw] * [src_w[ow*s+kw] == w]
    ow_pos = jnp.arange(w_out)[None, :] * stride + jnp.arange(k)[:, None]       # (kw, Wo)
    sel = jax.nn.one_hot(src_w[ow_pos], w, dtype=f32)                           # (kw, Wo, W)
    w_kkio = jnp.transpose(weight_oikk, (2, 3, 1, 0)).astype(f32)               # (kh, kw, Cin, Cout)
    bmat = jnp.einsum("xow,hxic->hwioc", sel, w_kkio).reshape(k, wcin, wocout)
    bmat = jnp.pad(bmat, ((0, 0), (0, wcin_p - wcin), (0, 0)))                  # zero lane-pad rows
    bmat = bmat.reshape(k * wcin_p, wocout)

    bias_row = jnp.tile(bias.astype(f32), w_out).reshape(1, wocout)

    # Layout plumbing only (cheap, small): channel-fastest rows, lane-padded, batch-padded.
    xs = jnp.transpose(x_nchw, (0, 2, 3, 1)).reshape(n, h, wcin)
    xs = jnp.pad(xs, ((0, n_pad - n), (0, 0), (0, wcin_p - wcin)))

    in_dtype = jnp.bfloat16 if use_bf16 else xs.dtype
    xs_k = xs.astype(in_dtype)
    ghk_k = ghk.astype(in_dtype)
    bmat_k = bmat.astype(in_dtype)

    kernel = functools.partial(_conv_kernel, k=k, b_blk=b_blk, h_out=h_out,
                               wcin_p=wcin_p, wocout=wocout)

    out = pl.pallas_call(
        kernel,
        out_shape=jax.ShapeDtypeStruct((n_pad, h_out, wocout), x_nchw.dtype),
        grid_spec=pltpu.PrefetchScalarGridSpec(
            num_scalar_prefetch=0,
            grid=(n_pad // b_blk,),
            in_specs=[
                pl.BlockSpec((b_blk, h, wcin_p), lambda i: (i, 0, 0)),
                # Constant-index blocks (resident across steps).  At production sizes use
                # pipeline_mode=pl.Buffered(1) here to halve their VMEM footprint (v7x).
                pl.BlockSpec((k * b_blk * h_out, b_blk * h), lambda i: (0, 0)),
                pl.BlockSpec((k * wcin_p, wocout), lambda i: (0, 0)),
                pl.BlockSpec((1, wocout), lambda i: (0, 0)),
            ],
            out_specs=pl.BlockSpec((b_blk, h_out, wocout), lambda i: (i, 0, 0)),
        ),
        compiler_params=pltpu.CompilerParams(
            dimension_semantics=("parallel",),
            vmem_limit_bytes=32 * 1024 * 1024,
        ),
    )(xs_k, ghk_k, bmat_k, bias_row)

    out = out[:n].reshape(n, h_out, w_out, c_out)        # free un-flatten (NHWC)
    if not nchw_output:
        return out                                       # skip the HBM-roundtrip transpose
    return jnp.transpose(out, (0, 3, 1, 2))              # NCHW for parity with PyTorch


def _reference(x_nchw, weight_oikk, bias, *, kernel_size, stride, upsample=None):
    x = x_nchw
    if upsample:
        x = jnp.repeat(jnp.repeat(x, upsample, axis=2), upsample, axis=3)
    pad = kernel_size // 2
    x = jnp.pad(x, ((0, 0), (0, 0), (pad, pad), (pad, pad)), mode="reflect")
    out = jax.lax.conv_general_dilated(
        x, weight_oikk, window_strides=(stride, stride), padding="VALID",
        dimension_numbers=("NCHW", "OIHW", "NCHW"))
    return out + bias.reshape(1, -1, 1, 1)


if __name__ == "__main__":
    # Module config: UpsampleConvLayer(in_channels=4, out_channels=8,
    #                                  kernel_size=3, stride=1, upsample=2)
    in_channels, out_channels, kernel_size, stride, upsample = 4, 8, 3, 1, 2

    key = jax.random.PRNGKey(0)
    kx, kw, kb = jax.random.split(key, 3)
    x = jax.random.normal(kx, (2, in_channels, 16, 16), dtype=jnp.float32)
    # Deterministic synthetic params (Conv2d shapes: (Cout, Cin, k, k), (Cout,))
    fan_in = in_channels * kernel_size * kernel_size
    bound = 1.0 / jnp.sqrt(fan_in)
    weight = jax.random.uniform(kw, (out_channels, in_channels, kernel_size, kernel_size),
                                minval=-bound, maxval=bound, dtype=jnp.float32)
    bias = jax.random.uniform(kb, (out_channels,), minval=-bound, maxval=bound,
                              dtype=jnp.float32)

    fwd = jax.jit(functools.partial(upsample_conv_layer, kernel_size=kernel_size,
                                    stride=stride, upsample=upsample))
    out = jax.block_until_ready(fwd(x, weight, bias))

    ref = _reference(x, weight, bias, kernel_size=kernel_size,
                     stride=stride, upsample=upsample)
    assert out.shape == ref.shape == (2, out_channels, 32, 32), out.shape
    assert jnp.allclose(out, ref, atol=1e-5, rtol=1e-5), float(jnp.max(jnp.abs(out - ref)))

    print("KERNEL_OK")
</pallas_src>

<mosaic_0001>
module attributes {stable_mosaic.version = 11 : i64} {
  func.func @_conv_kernel(%arg0: i32, %arg1: memref<1x16x128xf32, #tpu.memory_space<vmem>>, %arg2: memref<96x16xf32, #tpu.memory_space<vmem>>, %arg3: memref<384x256xf32, #tpu.memory_space<vmem>>, %arg4: memref<1x256xf32, #tpu.memory_space<vmem>>, %arg5: memref<1x32x256xf32, #tpu.memory_space<vmem>>) attributes {dimension_semantics = [#tpu.dimension_semantics<parallel>], iteration_bounds = array<i64: 2>, scalar_prefetch = 0 : i64, scratch_operands = 0 : i64, tpu.core_type = #tpu.core_type<tc>, window_params = [{transform_indices = @transform_0, window_bounds = array<i64: 1, 16, 128>}, {pipeline_mode = #tpu.pipeline_mode<synchronous>, transform_indices = @transform_1, window_bounds = array<i64: 96, 16>}, {pipeline_mode = #tpu.pipeline_mode<synchronous>, transform_indices = @transform_2, window_bounds = array<i64: 384, 256>}, {pipeline_mode = #tpu.pipeline_mode<synchronous>, transform_indices = @transform_3, window_bounds = array<i64: 1, 256>}, {transform_indices = @transform_4, window_bounds = array<i64: 1, 32, 256>}]} {
    %c0 = arith.constant 0 : index
    %c0_0 = arith.constant 0 : index
    %c0_1 = arith.constant 0 : index
    %0 = vector.load %arg1[%c0, %c0_0, %c0_1] : memref<1x16x128xf32, #tpu.memory_space<vmem>>, vector<1x16x128xf32>
    %1 = vector.shape_cast %0 : vector<1x16x128xf32> to vector<16x128xf32>
    %c0_2 = arith.constant 0 : index
    %c0_3 = arith.constant 0 : index
    %2 = vector.load %arg2[%c0_2, %c0_3] : memref<96x16xf32, #tpu.memory_space<vmem>>, vector<96x16xf32>
    %cst = arith.constant dense<0.000000e+00> : vector<96x128xf32>
    %3 = tpu.matmul %2, %1, %cst {dimension_numbers = #tpu.dot_dimension_numbers<[1], [0], [0], [1], [0, 0, 1, 1], [], []>} : vector<96x16xf32>, vector<16x128xf32>, vector<96x128xf32> -> vector<96x128xf32>
    %cst_4 = arith.constant 0.000000e+00 : f32
    %4 = vector.broadcast %cst_4 : f32 to vector<32x256xf32>
    %5 = vector.extract_strided_slice %3 {offsets = [0, 0], sizes = [32, 128], strides = [1, 1]} : vector<96x128xf32> to vector<32x128xf32>
    %c0_5 = arith.constant 0 : index
    %c0_6 = arith.constant 0 : index
    %6 = vector.load %arg3[%c0_5, %c0_6] : memref<384x256xf32, #tpu.memory_space<vmem>>, vector<128x256xf32>
    %cst_7 = arith.constant dense<0.000000e+00> : vector<32x256xf32>
    %7 = tpu.matmul %5, %6, %cst_7 {dimension_numbers = #tpu.dot_dimension_numbers<[1], [0], [0], [1], [0, 0, 1, 1], [], []>} : vector<32x128xf32>, vector<128x256xf32>, vector<32x256xf32> -> vector<32x256xf32>
    %8 = arith.addf %4, %7 : vector<32x256xf32>
    %9 = vector.extract_strided_slice %3 {offsets = [32, 0], sizes = [32, 128], strides = [1, 1]} : vector<96x128xf32> to vector<32x128xf32>
    %c128 = arith.constant 128 : index
    %c0_8 = arith.constant 0 : index
    %10 = vector.load %arg3[%c128, %c0_8] : memref<384x256xf32, #tpu.memory_space<vmem>>, vector<128x256xf32>
    %cst_9 = arith.constant dense<0.000000e+00> : vector<32x256xf32>
    %11 = tpu.matmul %9, %10, %cst_9 {dimension_numbers = #tpu.dot_dimension_numbers<[1], [0], [0], [1], [0, 0, 1, 1], [], []>} : vector<32x128xf32>, vector<128x256xf32>, vector<32x256xf32> -> vector<32x256xf32>
    %12 = arith.addf %8, %11 : vector<32x256xf32>
    %13 = vector.extract_strided_slice %3 {offsets = [64, 0], sizes = [32, 128], strides = [1, 1]} : vector<96x128xf32> to vector<32x128xf32>
    %c256 = arith.constant 256 : index
    %c0_10 = arith.constant 0 : index
    %14 = vector.load %arg3[%c256, %c0_10] : memref<384x256xf32, #tpu.memory_space<vmem>>, vector<128x256xf32>
    %cst_11 = arith.constant dense<0.000000e+00> : vector<32x256xf32>
    %15 = tpu.matmul %13, %14, %cst_11 {dimension_numbers = #tpu.dot_dimension_numbers<[1], [0], [0], [1], [0, 0, 1, 1], [], []>} : vector<32x128xf32>, vector<128x256xf32>, vector<32x256xf32> -> vector<32x256xf32>
    %16 = arith.addf %12, %15 : vector<32x256xf32>
    %c0_12 = arith.constant 0 : index
    %c0_13 = arith.constant 0 : index
    %17 = vector.load %arg4[%c0_12, %c0_13] : memref<1x256xf32, #tpu.memory_space<vmem>>, vector<1x256xf32>
    %18 = vector.broadcast %17 : vector<1x256xf32> to vector<32x256xf32>
    %19 = arith.addf %16, %18 : vector<32x256xf32>
    %20 = vector.shape_cast %19 : vector<32x256xf32> to vector<1x32x256xf32>
    %c0_14 = arith.constant 0 : index
    %c0_15 = arith.constant 0 : index
    %c0_16 = arith.constant 0 : index
    %21 = vector.load %arg5[%c0_14, %c0_15, %c0_16] : memref<1x32x256xf32, #tpu.memory_space<vmem>>, vector<1x32x256xf32>
    tpu.vector_store %arg5[%c0_14, %c0_15, %c0_16], %20 {strides = array<i32>} : memref<1x32x256xf32, #tpu.memory_space<vmem>>, vector<1x32x256xf32>,
    return
  }
  func.func @transform_0(%arg0: i32) -> (i32, i32, i32) {
    %c0_i32 = arith.constant 0 : i32
    %c0_i32_0 = arith.constant 0 : i32
    %c0_i32_1 = arith.constant 0 : i32
    return %arg0, %c0_i32, %c0_i32_0 : i32, i32, i32
  }
  func.func @transform_1(%arg0: i32) -> (i32, i32) {
    %c0_i32 = arith.constant 0 : i32
    %c0_i32_0 = arith.constant 0 : i32
    %c0_i32_1 = arith.constant 0 : i32
    return %c0_i32, %c0_i32_0 : i32, i32
  }
  func.func @transform_2(%arg0: i32) -> (i32, i32) {
    %c0_i32 = arith.constant 0 : i32
    %c0_i32_0 = arith.constant 0 : i32
    %c0_i32_1 = arith.constant 0 : i32
    return %c0_i32, %c0_i32_0 : i32, i32
  }
  func.func @transform_3(%arg0: i32) -> (i32, i32) {
    %c0_i32 = arith.constant 0 : i32
    %c0_i32_0 = arith.constant 0 : i32
    %c0_i32_1 = arith.constant 0 : i32
    return %c0_i32, %c0_i32_0 : i32, i32
  }
  func.func @transform_4(%arg0: i32) -> (i32, i32, i32) {
    %c0_i32 = arith.constant 0 : i32
    %c0_i32_0 = arith.constant 0 : i32
    %c0_i32_1 = arith.constant 0 : i32
    return %arg0, %c0_i32, %c0_i32_0 : i32, i32, i32
  }
}

</mosaic_0001>

<llo_original>
// kernel: tile.8
$region0: #{tile.8}
  #allocation0 [shape = 's32[1]{0}', space=sflag, size = 0x4, scoped, tag = 'scoped memory for tile.8']
  %s0 = inlined_call_operand.vmem [shape: f32[8], index: 0, kind: input, shape index: {}]
  %s1 = inlined_call_operand.vmem [shape: f32[32,8], index: 1, kind: output, shape index: {}]
  // Predicated region
  $region2: #{tile.8} parent=0 // pred_check
    _
  $region3: #{tile.8} parent=0 // pred_check_branch
    %3 = sbr.rel (0) target = $region5
  $region4: #{tile.8} parent=0 // pred_region
    _
  $region5: #{tile.8} parent=0 // pred_fallthru
    _
  %v4 = vld [vmem:[%s0] ss:$0 sm:$0xff]
  %5 = vst [vmem:[%s1] sm:$0xff] %v4
  %s6 = scalar_lea.vmem %s1, 8
  %7 = vst [vmem:[%s6] sm:$0xff] %v4
  %s8 = scalar_lea.vmem %s1, 16
  %9 = vst [vmem:[%s8] sm:$0xff] %v4
  %s10 = scalar_lea.vmem %s1, 24
  %11 = vst [vmem:[%s10] sm:$0xff] %v4

// kernel: tile.9
$region0: #{tile.9}
  %s0 = inlined_call_operand.vmem [shape: f32[32,8], index: 0, kind: input, shape index: {}]
  %s1 = inlined_call_operand.vmem [shape: f32[1,256], index: 1, kind: output, shape index: {}]
  $region1: #{tile.9} parent=0
    #allocation0 [shape = 'u8[8192]{0}', space=vmem, size = 0x2000, scoped, tag = 'scoped mem for output reshape']
    %s2 = smov 3
    %v3 = vld [vmem:[%s0] ss:$16 sm:%s2]
    %vm4 = vcmask 64512
    %5 = vst.msk [vmem:[#allocation0] ss:$8 sm:$0x3] %vm4, %v3
    %s6 = scalar_lea.vmem %s0, 15
    %s7 = smov 3
    %v8 = vld [vmem:[%s6] ss:$16 sm:%s7]
    %9 = vrot.lane.b32.xlu0 %v8, 120
    %v10 = vpop.permute.xlu0 %9
    %vm11 = vcmask 1048512
    %12 = vst.msk [vmem:[#allocation0] ss:$8 sm:$0x3] %vm11, %v10
    %s13 = scalar_lea.vmem %s0, 14
    %s14 = smov 3
    %v15 = vld [vmem:[%s13] ss:$16 sm:%s14]
    %16 = vrot.lane.b32.xlu0 %v15, 112
    %v17 = vpop.permute.xlu0 %16
    %vm18 = vcmask 982912
    %19 = vst.msk [vmem:[#allocation0] ss:$8 sm:$0x3] %vm18, %v17
    %s20 = scalar_lea.vmem %s0, 13
    %s21 = smov 3
    %v22 = vld [vmem:[%s20] ss:$16 sm:%s21]
    %23 = vrot.lane.b32.xlu0 %v22, 104
    %v24 = vpop.permute.xlu0 %23
    %vm25 = vcmask 917312
    %26 = vst.msk [vmem:[#allocation0] ss:$8 sm:$0x3] %vm25, %v24
    %s27 = scalar_lea.vmem %s0, 12
    %s28 = smov 3
    %v29 = vld [vmem:[%s27] ss:$16 sm:%s28]
    %30 = vrot.lane.b32.xlu0 %v29, 96
    %v31 = vpop.permute.xlu0 %30
    %vm32 = vcmask 851712
    %33 = vst.msk [vmem:[#allocation0] ss:$8 sm:$0x3] %vm32, %v31
    %s34 = scalar_lea.vmem %s0, 11
    %s35 = smov 3
    %v36 = vld [vmem:[%s34] ss:$16 sm:%s35]
    %37 = vrot.lane.b32.xlu0 %v36, 88
    %v38 = vpop.permute.xlu0 %37
    %vm39 = vcmask 786112
    %40 = vst.msk [vmem:[#allocation0] ss:$8 sm:$0x3] %vm39, %v38
    %s41 = scalar_lea.vmem %s0, 10
    %s42 = smov 3
    %v43 = vld [vmem:[%s41] ss:$16 sm:%s42]
    %44 = vrot.lane.b32.xlu0 %v43, 80
    %v45 = vpop.permute.xlu0 %44
    %vm46 = vcmask 720512
    %47 = vst.msk [vmem:[#allocation0] ss:$8 sm:$0x3] %vm46, %v45
    %s48 = scalar_lea.vmem %s0, 9
    %s49 = smov 3
    %v50 = vld [vmem:[%s48] ss:$16 sm:%s49]
    %51 = vrot.lane.b32.xlu0 %v50, 72
    %v52 = vpop.permute.xlu0 %51
    %vm53 = vcmask 654912
    %54 = vst.msk [vmem:[#allocation0] ss:$8 sm:$0x3] %vm53, %v52
    %s55 = scalar_lea.vmem %s0, 8
    %s56 = smov 3
    %v57 = vld [vmem:[%s55] ss:$16 sm:%s56]
    %58 = vrot.lane.b32.xlu0 %v57, 64
    %v59 = vpop.permute.xlu0 %58
    %vm60 = vcmask 589312
    %61 = vst.msk [vmem:[#allocation0] ss:$8 sm:$0x3] %vm60, %v59
    %s62 = scalar_lea.vmem %s0, 7
    %s63 = smov 3
    %v64 = vld [vmem:[%s62] ss:$16 sm:%s63]
    %65 = vrot.lane.b32.xlu0 %v64, 56
    %v66 = vpop.permute.xlu0 %65
    %vm67 = vcmask 523712
    %68 = vst.msk [vmem:[#allocation0] ss:$8 sm:$0x3] %vm67, %v66
    %s69 = scalar_lea.vmem %s0, 6
    %s70 = smov 3
    %v71 = vld [vmem:[%s69] ss:$16 sm:%s70]
    %72 = vrot.lane.b32.xlu0 %v71, 48
    %v73 = vpop.permute.xlu0 %72
    %vm74 = vcmask 458112
    %75 = vst.msk [vmem:[#allocation0] ss:$8 sm:$0x3] %vm74, %v73
    %s76 = scalar_lea.vmem %s0, 5
    %s77 = smov 3
    %v78 = vld [vmem:[%s76] ss:$16 sm:%s77]
    %79 = vrot.lane.b32.xlu0 %v78, 40
    %v80 = vpop.permute.xlu0 %79
    %vm81 = vcmask 392512
    %82 = vst.msk [vmem:[#allocation0] ss:$8 sm:$0x3] %vm81, %v80
    %s83 = scalar_lea.vmem %s0, 4
    %s84 = smov 3
    %v85 = vld [vmem:[%s83] ss:$16 sm:%s84]
    %86 = vrot.lane.b32.xlu0 %v85, 32
    %v87 = vpop.permute.xlu0 %86
    %vm88 = vcmask 326912
    %89 = vst.msk [vmem:[#allocation0] ss:$8 sm:$0x3] %vm88, %v87
    %s90 = scalar_lea.vmem %s0, 3
    %s91 = smov 3
    %v92 = vld [vmem:[%s90] ss:$16 sm:%s91]
    %93 = vrot.lane.b32.xlu0 %v92, 24
    %v94 = vpop.permute.xlu0 %93
    %vm95 = vcmask 261312
    %96 = vst.msk [vmem:[#allocation0] ss:$8 sm:$0x3] %vm95, %v94
    %s97 = scalar_lea.vmem %s0, 2
    %s98 = smov 3
    %v99 = vld [vmem:[%s97] ss:$16 sm:%s98]
    %100 = vrot.lane.b32.xlu0 %v99, 16
    %v101 = vpop.permute.xlu0 %100
    %vm102 = vcmask 195712
    %103 = vst.msk [vmem:[#allocation0] ss:$8 sm:$0x3] %vm102, %v101
    %s104 = scalar_lea.vmem %s0, 1
    %s105 = smov 3
    %v106 = vld [vmem:[%s104] ss:$16 sm:%s105]
    %107 = vrot.lane.b32.xlu0 %v106, 8
    %v108 = vpop.permute.xlu0 %107
    %vm109 = vcmask 130112
    %110 = vst.msk [vmem:[#allocation0] ss:$8 sm:$0x3] %vm109, %v108
    %s112 = sshllo.u32 0, 1
    %v114 = vld [vmem:[#allocation0] sm:%s112]
    %s115 = sshllo.u32 0, 1
    %116 = vst [vmem:[%s1] sm:%s115] %v114
    %s117 = scalar_lea.vmem [#allocation0], 8
    %v118 = vld [vmem:[%s117] sm:%s112]
    %s119 = sshllo.u32 0, 1
    %s120 = scalar_lea.vmem %s1, 1
    %121 = vst [vmem:[%s120] sm:%s119] %v118

// kernel: upsample_conv_layer.1
$region0: #{upsample_conv_layer.1}
  #allocation0 [shape = 'u32[]', space=smem, size = 0x4, offset = 0x4, fixed_abs, tag = 'smem constant byte address 0x4 - core index']
  #allocation1 [shape = 'u32[144,128]{1,0:T(1,128)}', space=vmem, size = 0x12000, scoped, tag = 'internal scratch']
  %s0 = inlined_call_operand.vmem [shape: f32[2,16,128], index: 0, kind: input, shape index: {}]
  %s1 = inlined_call_operand.vmem [shape: f32[96,16], index: 1, kind: input, shape index: {}]
  %s2 = inlined_call_operand.vmem [shape: f32[384,256], index: 2, kind: input, shape index: {}]
  %s3 = inlined_call_operand.vmem [shape: f32[1,256], index: 3, kind: input, shape index: {}]
  %s4 = inlined_call_operand.vmem [shape: f32[2,32,256], index: 4, kind: output, shape index: {}]
  %s5 = sld [smem:[#allocation0]]
  $region49: #{upsample_conv_layer.1} parent=0
    _
  %s7 = ssub.s32 1, %s5
  %s8 = scalar_select 0, %s7, %s5
  loop: start=0, step=1, limit=4
  $region2: #{upsample_conv_layer.1} parent=0 // loop_pre_header
    _
  $region3: #{upsample_conv_layer.1} parent=0 // loop_header
    %s10 = sphi 0, %s14
    %p11 = scmp.ge.s32.totalorder %s10, 4
    %s20 = sphi 0, %s22
    %s23 = sphi 0, %s20
    %s24 = sphi 0, %s23
    %s40 = sphi 0, %s24
    %s44 = sphi 0, %s44
    %s46 = sphi 0, %s44
    %s47 = sphi 0, %s46
    %s61 = sphi 0, %s47
    %s65 = sphi 0, %s65
    %s67 = sphi 0, %s65
    %s68 = sphi 0, %s67
    %s82 = sphi 0, %s68
    %s86 = sphi 0, %s86
    %s88 = sphi 0, %s86
    %s89 = sphi 0, %s88
    %s103 = sphi 0, %s89
    %s109 = sphi 0, %s111
    %s112 = sphi 0, %s109
    %s113 = sphi 0, %s112
    %s129 = sphi 0, %s113
  $region4: #{upsample_conv_layer.1} parent=0 // loop_header_branch
    %13 = sbr.rel (%p11) target = $region8
  $region5: #{upsample_conv_layer.1} parent=0 // loop_body
    %s15 = ssub.s32 %s10, 1
    %s16 = ssub.s32 %s10, 2
    %s17 = sadd.s32 %s10, 1
    %s18 = ssub.s32 %s10, %s17
    %p19 = scmp.eq.s32.totalorder %s18, 0
    %s21 = sadd.s32 %s20, 1
    %s22 = scalar_select %p19, %s20, %s21
    %p25 = pneg %p19
    %p26 = scmp.eq.s32.totalorder %s10, 1
    %p27 = por %p25, %p26
    %p28 = scmp.ne.s32.totalorder %s20, %s23
    %p29 = scmp.eq.s32.totalorder %s10, 0
    %p30 = por %p28, %p29
    %p31 = scmp.ne.s32.totalorder %s20, %s23
    %p32 = scmp.eq.s32.totalorder %s15, 1
    %p33 = por %p31, %p32
    %p34 = scmp.ne.s32.totalorder %s23, %s24
    %p35 = scmp.eq.s32.totalorder %s15, 0
    %p36 = por %p34, %p35
    %p37 = scmp.ne.s32.totalorder %s23, %s24
    %p38 = scmp.eq.s32.totalorder %s16, 1
    %p39 = por %p37, %p38
    %p41 = scmp.ne.s32.totalorder %s24, %s40
    %p42 = scmp.eq.s32.totalorder %s16, 0
    %p43 = por %p41, %p42
    %s45 = sadd.s32 %s44, 1
    %p48 = scmp.eq.s32.totalorder %s10, 1
    %p49 = scmp.ne.s32.totalorder %s44, %s46
    %p50 = scmp.eq.s32.totalorder %s10, 0
    %p51 = por %p49, %p50
    %p52 = scmp.ne.s32.totalorder %s44, %s46
    %p53 = scmp.eq.s32.totalorder %s15, 1
    %p54 = por %p52, %p53
    %p55 = scmp.ne.s32.totalorder %s46, %s47
    %p56 = scmp.eq.s32.totalorder %s15, 0
    %p57 = por %p55, %p56
    %p58 = scmp.ne.s32.totalorder %s46, %s47
    %p59 = scmp.eq.s32.totalorder %s16, 1
    %p60 = por %p58, %p59
    %p62 = scmp.ne.s32.totalorder %s47, %s61
    %p63 = scmp.eq.s32.totalorder %s16, 0
    %p64 = por %p62, %p63
    %s66 = sadd.s32 %s65, 1
    %p69 = scmp.eq.s32.totalorder %s10, 1
    %p70 = scmp.ne.s32.totalorder %s65, %s67
    %p71 = scmp.eq.s32.totalorder %s10, 0
    %p72 = por %p70, %p71
    %p73 = scmp.ne.s32.totalorder %s65, %s67
    %p74 = scmp.eq.s32.totalorder %s15, 1
    %p75 = por %p73, %p74
    %p76 = scmp.ne.s32.totalorder %s67, %s68
    %p77 = scmp.eq.s32.totalorder %s15, 0
    %p78 = por %p76, %p77
    %p79 = scmp.ne.s32.totalorder %s67, %s68
    %p80 = scmp.eq.s32.totalorder %s16, 1
    %p81 = por %p79, %p80
    %p83 = scmp.ne.s32.totalorder %s68, %s82
    %p84 = scmp.eq.s32.totalorder %s16, 0
    %p85 = por %p83, %p84
    %s87 = sadd.s32 %s86, 1
    %p90 = scmp.eq.s32.totalorder %s10, 1
    %p91 = scmp.ne.s32.totalorder %s86, %s88
    %p92 = scmp.eq.s32.totalorder %s10, 0
    %p93 = por %p91, %p92
    %p94 = scmp.ne.s32.totalorder %s86, %s88
    %p95 = scmp.eq.s32.totalorder %s15, 1
    %p96 = por %p94, %p95
    %p97 = scmp.ne.s32.totalorder %s88, %s89
    %p98 = scmp.eq.s32.totalorder %s15, 0
    %p99 = por %p97, %p98
    %p100 = scmp.ne.s32.totalorder %s88, %s89
    %p101 = scmp.eq.s32.totalorder %s16, 1
    %p102 = por %p100, %p101
    %p104 = scmp.ne.s32.totalorder %s89, %s103
    %p105 = scmp.eq.s32.totalorder %s16, 0
    %p106 = por %p104, %p105
    %s107 = ssub.s32 %s10, %s17
    %p108 = scmp.eq.s32.totalorder %s107, 0
    %s110 = sadd.s32 %s109, 1
    %s111 = scalar_select %p108, %s109, %s110
    %p114 = pneg %p108
    %p115 = scmp.eq.s32.totalorder %s10, 1
    %p116 = por %p114, %p115
    %p117 = scmp.ne.s32.totalorder %s109, %s112
    %p118 = scmp.eq.s32.totalorder %s10, 0
    %p119 = por %p117, %p118
    %p120 = scmp.ne.s32.totalorder %s109, %s112
    %p121 = scmp.eq.s32.totalorder %s15, 1
    %p122 = por %p120, %p121
    %p123 = scmp.ne.s32.totalorder %s112, %s113
    %p124 = scmp.eq.s32.totalorder %s15, 0
    %p125 = por %p123, %p124
    %p126 = scmp.ne.s32.totalorder %s112, %s113
    %p127 = scmp.eq.s32.totalorder %s16, 1
    %p128 = por %p126, %p127
    %p130 = scmp.ne.s32.totalorder %s113, %s129
    %p131 = scmp.eq.s32.totalorder %s16, 0
    %p132 = por %p130, %p131
    %p133 = scmp.le.s32.totalorder 1, %s10
    %p134 = scmp.lt.s32.totalorder %s10, 3
    %p135 = pnand %p133, %p134
    %p136 = pneg %p135
    // Predicated region
    $region9: #{upsample_conv_layer.1} parent=5 // pred_check
      _
    $region10: #{upsample_conv_layer.1} parent=5 // pred_check_branch
      %138 = sbr.rel (%p135) target = $region12
    $region11: #{upsample_conv_layer.1} parent=5 // pred_region
      %s139 = ssub.s32 %s10, 1
      // Predicated region
      $region13: #{upsample_conv_layer.1} parent=11 // pred_check
        %p140 = pneg %p57
      $region14: #{upsample_conv_layer.1} parent=11 // pred_check_branch
        %142 = sbr.rel (%p140) target = $region16
      $region15: #{upsample_conv_layer.1} parent=11 // pred_region
        _
      $region16: #{upsample_conv_layer.1} parent=11 // pred_fallthru
        _
      // Predicated region
      $region17: #{upsample_conv_layer.1} parent=11 // pred_check
        %p143 = pneg %p78
      $region18: #{upsample_conv_layer.1} parent=11 // pred_check_branch
        %145 = sbr.rel (%p143) target = $region20
      $region19: #{upsample_conv_layer.1} parent=11 // pred_region
        _
      $region20: #{upsample_conv_layer.1} parent=11 // pred_fallthru
        _
      // Predicated region
      $region21: #{upsample_conv_layer.1} parent=11 // pred_check
        %p146 = pneg %p99
      $region22: #{upsample_conv_layer.1} parent=11 // pred_check_branch
        %148 = sbr.rel (%p146) target = $region24
      $region23: #{upsample_conv_layer.1} parent=11 // pred_region
        _
      $region24: #{upsample_conv_layer.1} parent=11 // pred_fallthru
        _
    $region12: #{upsample_conv_layer.1} parent=5 // pred_fallthru
      _
    %p149 = scmp.lt.s32.totalorder %s10, 2
    // Predicated region
    $region25: #{upsample_conv_layer.1} parent=5 // pred_check
      %p150 = pneg %p149
    $region26: #{upsample_conv_layer.1} parent=5 // pred_check_branch
      %152 = sbr.rel (%p150) target = $region28
    $region27: #{upsample_conv_layer.1} parent=5 // pred_region
      // Predicated region
      $region29: #{upsample_conv_layer.1} parent=27 // pred_check
        %p153 = pneg %p30
      $region30: #{upsample_conv_layer.1} parent=27 // pred_check_branch
        %155 = sbr.rel (%p153) target = $region32
      $region31: #{upsample_conv_layer.1} parent=27 // pred_region
        %p156 = scmp.lt.s32.totalorder %s10, 1
        %s157 = scalar_select %p156, %s10, 1
        %s158 = smul.addr %s157, 2
        %s159 = smul.addr %s158, 8
        %s160 = scalar_lea.vmem %s0, %s159
      $region32: #{upsample_conv_layer.1} parent=27 // pred_fallthru
        _
    $region28: #{upsample_conv_layer.1} parent=5 // pred_fallthru
      _
    %p161 = scmp.le.s32.totalorder 1, %s10
    %p162 = scmp.lt.s32.totalorder %s10, 3
    %p163 = pnand %p161, %p162
    %p164 = pneg %p163
    // Predicated region
    $region33: #{upsample_conv_layer.1} parent=5 // pred_check
      _
    $region34: #{upsample_conv_layer.1} parent=5 // pred_check_branch
      %166 = sbr.rel (%p163) target = $region36
    $region35: #{upsample_conv_layer.1} parent=5 // pred_region
      %s167 = ssub.s32 %s10, 1
      %p168 = scmp.lt.s32.totalorder %s15, 1
      %s169 = scalar_select %p168, %s15, 1
      %s170 = smul.addr %s169, 2
      %s171 = smul.addr %s170, 8
      %s172 = scalar_lea.vmem %s0, %s171
      %p173 = pneg %p36
      %p174 = pneg %p33
      %p175 = pneg %p57
      %p176 = pneg %p54
      %p177 = pneg %p78
      %p178 = pneg %p75
      %p179 = pneg %p99
      %p180 = pneg %p96
      %p181 = pneg %p125
      %p182 = pneg %p122
      %p183 = scmp.lt.s32.totalorder %s15, 1
      %s184 = scalar_select %p183, %s15, 1
      %s185 = smul.addr %s184, 8
      %s186 = smul.addr %s185, 8
      %s187 = scalar_lea.vmem %s4, %s186
      %p188 = scmp.lt.s32.totalorder %s15, 1
      %s189 = scalar_select %p188, %s15, 1
      %s190 = smul.addr %s189, 2
      %s191 = smul.addr %s190, 8
      %s192 = scalar_lea.vmem %s0, %s191
      %p193 = scmp.lt.s32.totalorder %s15, 1
      %s194 = scalar_select %p193, %s15, 1
      %s195 = smul.addr %s194, 8
      %s196 = smul.addr %s195, 8
      %s197 = scalar_lea.vmem %s4, %s196
      %v198 = vld [vmem:[%s192] sm:$0xff]
      %v199 = vld [vmem:[%s192 + $0x8] sm:$0xff]
      %v200 = vld [vmem:[%s1] sm:$0xff]
      %v201 = vld [vmem:[%s1 + $0x8] sm:$0xff]
      %v202 = vld [vmem:[%s1 + $0x10] sm:$0xff]
      %v203 = vld [vmem:[%s1 + $0x18] sm:$0xff]
      %v204 = vld [vmem:[%s1 + $0x20] sm:$0xff]
      %v205 = vld [vmem:[%s1 + $0x28] sm:$0xff]
      %v206 = vld [vmem:[%s1 + $0x30] sm:$0xff]
      %v207 = vld [vmem:[%s1 + $0x38] sm:$0xff]
      %v208 = vld [vmem:[%s1 + $0x40] sm:$0xff]
      %v209 = vld [vmem:[%s1 + $0x48] sm:$0xff]
      %v210 = vld [vmem:[%s1 + $0x50] sm:$0xff]
      %v211 = vld [vmem:[%s1 + $0x58] sm:$0xff]
      %vm212 = vcmask 130048
      %v214 = vsel %vm212, %v200, 0
      %v217 = vsel %vm212, %v201, 0
      %v220 = vsel %vm212, %v202, 0
      %v223 = vsel %vm212, %v203, 0
      %v226 = vsel %vm212, %v204, 0
      %v229 = vsel %vm212, %v205, 0
      %v232 = vsel %vm212, %v206, 0
      %v235 = vsel %vm212, %v207, 0
      %v238 = vsel %vm212, %v208, 0
      %v241 = vsel %vm212, %v209, 0
      %v244 = vsel %vm212, %v210, 0
      %v247 = vsel %vm212, %v211, 0
      %249 = vmatprep.subr.mxu0 0.0
      %250 = vmatpush1.msra.mxu0 %v198
      %251 = vmatprep.subr.mxu0 0.0
      %252 = vmatpush1.msra.mxu0 %v199
      %253 = vmatprep.subr.mxu0 0.0
      %254 = vmatpush1.msra.mxu0 0.0
      %255 = vmatprep.subr.mxu0 0.0
      %256 = vmatpush1.msra.mxu0 0.0
      %257 = vmatprep.subr.mxu0 0.0
      %258 = vmatpush1.msra.mxu0 0.0
      %259 = vmatprep.subr.mxu0 0.0
      %260 = vmatpush1.msra.mxu0 0.0
      %261 = vmatprep.subr.mxu0 0.0
      %262 = vmatpush1.msra.mxu0 0.0
      %263 = vmatprep.subr.mxu0 0.0
      %264 = vmatpush1.msra.mxu0 0.0
      %265 = vmatprep.subr.mxu0 0.0
      %266 = vmatpush1.msra.mxu0 0.0
      %267 = vmatprep.subr.mxu0 0.0
      %268 = vmatpush1.msra.mxu0 0.0
      %269 = vmatprep.subr.mxu0 0.0
      %270 = vmatpush1.msra.mxu0 0.0
      %271 = vmatprep.subr.mxu0 0.0
      %272 = vmatpush1.msra.mxu0 0.0
      %273 = vmatprep.subr.mxu0 0.0
      %274 = vmatpush1.msra.mxu0 0.0
      %275 = vmatprep.subr.mxu0 0.0
      %276 = vmatpush1.msra.mxu0 0.0
      %277 = vmatprep.subr.mxu0 0.0
      %278 = vmatpush1.msra.mxu0 0.0
      %279 = vmatprep.subr.mxu0 0.0
      %280 = vmatpush1.msra.mxu0 0.0
      %281 = vmatprep.subr.mxu0 0.0
      %282 = vmatpush1.msra.mxu0 0.0
      %283 = vmatprep.subr.mxu0 0.0
      %284 = vmatpush1.msra.mxu0 0.0
      %285 = vmatprep.subr.mxu0 0.0
      %286 = vmatpush1.msra.mxu0 0.0
      %287 = vmatprep.subr.mxu0 0.0
      %288 = vmatpush1.msra.mxu0 0.0
      %289 = vmatprep.subr.mxu0 0.0
      %290 = vmatpush1.msra.mxu0 0.0
      %291 = vmatprep.subr.mxu0 0.0
      %292 = vmatpush1.msra.mxu0 0.0
      %293 = vmatprep.subr.mxu0 0.0
      %294 = vmatpush1.msra.mxu0 0.0
      %295 = vmatprep.subr.mxu0 0.0
      %296 = vmatpush1.msra.mxu0 0.0
      %297 = vmatprep.subr.mxu0 0.0
      %298 = vmatpush1.msra.mxu0 0.0
      %299 = vmatprep.subr.mxu0 0.0
      %300 = vmatpush1.msra.mxu0 0.0
      %301 = vmatprep.subr.mxu0 0.0
      %302 = vmatpush1.msra.mxu0 0.0
      %303 = vmatprep.subr.mxu0 0.0
      %304 = vmatpush1.msra.mxu0 0.0
      %305 = vmatprep.subr.mxu0 0.0
      %306 = vmatpush1.msra.mxu0 0.0
      %307 = vmatprep.subr.mxu0 0.0
      %308 = vmatpush1.msra.mxu0 0.0
      %309 = vmatprep.subr.mxu0 0.0
      %310 = vmatpush1.msra.mxu0 0.0
      %311 = vmatprep.subr.mxu0 0.0
      %312 = vmatpush1.msra.mxu0 0.0
      %313 = vmatprep.mubr.f32.mxu0 0.0
      %314 = vmatmul.mubr.f32.gmra.mrb[0].mxu0 %v214
      %v315 = vpop.f32.mrb[0].mxu0
      %v316 = vadd.f32 0.0, %v315
      %v317 = vpop.f32.mrb[0].mxu0
      %318 = vmatprep.mubr.f32.mxu0 0.0
      %319 = vmatmul.mubr.f32.gmra.mrb[0].mxu0 %v217
      %v320 = vpop.f32.mrb[0].mxu0
      %v321 = vadd.f32 0.0, %v320
      %v322 = vpop.f32.mrb[0].mxu0
      %323 = vmatprep.mubr.f32.mxu0 0.0
      %324 = vmatmul.mubr.f32.gmra.mrb[0].mxu0 %v220
      %v325 = vpop.f32.mrb[0].mxu0
      %v326 = vadd.f32 0.0, %v325
      %v327 = vpop.f32.mrb[0].mxu0
      %328 = vmatprep.mubr.f32.mxu0 0.0
      %329 = vmatmul.mubr.f32.gmra.mrb[0].mxu0 %v223
      %v330 = vpop.f32.mrb[0].mxu0
      %v331 = vadd.f32 0.0, %v330
      %v332 = vpop.f32.mrb[0].mxu0
      %333 = vmatprep.mubr.f32.mxu0 0.0
      %334 = vmatmul.mubr.f32.gmra.mrb[0].mxu0 %v226
      %v335 = vpop.f32.mrb[0].mxu0
      %v336 = vadd.f32 0.0, %v335
      %v337 = vpop.f32.mrb[0].mxu0
      %338 = vmatprep.mubr.f32.mxu0 0.0
      %339 = vmatmul.mubr.f32.gmra.mrb[0].mxu0 %v229
      %v340 = vpop.f32.mrb[0].mxu0
      %v341 = vadd.f32 0.0, %v340
      %v342 = vpop.f32.mrb[0].mxu0
      %343 = vmatprep.mubr.f32.mxu0 0.0
      %344 = vmatmul.mubr.f32.gmra.mrb[0].mxu0 %v232
      %v345 = vpop.f32.mrb[0].mxu0
      %v346 = vadd.f32 0.0, %v345
      %v347 = vpop.f32.mrb[0].mxu0
      %348 = vmatprep.mubr.f32.mxu0 0.0
      %349 = vmatmul.mubr.f32.gmra.mrb[0].mxu0 %v235
      %v350 = vpop.f32.mrb[0].mxu0
      %v351 = vadd.f32 0.0, %v350
      %v352 = vpop.f32.mrb[0].mxu0
      %353 = vmatprep.mubr.f32.mxu0 0.0
      %354 = vmatmul.mubr.f32.gmra.mrb[0].mxu0 %v238
      %v355 = vpop.f32.mrb[0].mxu0
      %v356 = vadd.f32 0.0, %v355
      %v357 = vpop.f32.mrb[0].mxu0
      %358 = vmatprep.mubr.f32.mxu0 0.0
      %359 = vmatmul.mubr.f32.gmra.mrb[0].mxu0 %v241
      %v360 = vpop.f32.mrb[0].mxu0
      %v361 = vadd.f32 0.0, %v360
      %v362 = vpop.f32.mrb[0].mxu0
      %363 = vmatprep.mubr.f32.mxu0 0.0
      %364 = vmatmul.mubr.f32.gmra.mrb[0].mxu0 %v244
      %v365 = vpop.f32.mrb[0].mxu0
      %v366 = vadd.f32 0.0, %v365
      %v367 = vpop.f32.mrb[0].mxu0
      %368 = vmatprep.mubr.f32.mxu0 0.0
      %369 = vmatmul.mubr.f32.gmra.mrb[0].mxu0 %v247
      %v370 = vpop.f32.mrb[0].mxu0
      %v371 = vadd.f32 0.0, %v370
      %v372 = vpop.f32.mrb[0].mxu0
      %373 = vdwg.mxu0
      %v374 = vld [vmem:[%s2] sm:$0xff]
      %v375 = vld [vmem:[%s2 + $0x8] sm:$0xff]
      %v376 = vld [vmem:[%s2 + $0x10] sm:$0xff]
      %v377 = vld [vmem:[%s2 + $0x18] sm:$0xff]
      %v378 = vld [vmem:[%s2 + $0x20] sm:$0xff]
      %v379 = vld [vmem:[%s2 + $0x28] sm:$0xff]
      %v380 = vld [vmem:[%s2 + $0x30] sm:$0xff]
      %v381 = vld [vmem:[%s2 + $0x38] sm:$0xff]
      %v382 = vld [vmem:[%s2 + $0x40] sm:$0xff]
      %v383 = vld [vmem:[%s2 + $0x48] sm:$0xff]
      %v384 = vld [vmem:[%s2 + $0x50] sm:$0xff]
      %v385 = vld [vmem:[%s2 + $0x58] sm:$0xff]
      %v386 = vld [vmem:[%s2 + $0x60] sm:$0xff]
      %v387 = vld [vmem:[%s2 + $0x68] sm:$0xff]
      %v388 = vld [vmem:[%s2 + $0x70] sm:$0xff]
      %v389 = vld [vmem:[%s2 + $0x78] sm:$0xff]
      %v390 = vld [vmem:[%s2 + $0x80] sm:$0xff]
      %v391 = vld [vmem:[%s2 + $0x88] sm:$0xff]
      %v392 = vld [vmem:[%s2 + $0x90] sm:$0xff]
      %v393 = vld [vmem:[%s2 + $0x98] sm:$0xff]
      %v394 = vld [vmem:[%s2 + $0xa0] sm:$0xff]
      %v395 = vld [vmem:[%s2 + $0xa8] sm:$0xff]
      %v396 = vld [vmem:[%s2 + $0xb0] sm:$0xff]
      %v397 = vld [vmem:[%s2 + $0xb8] sm:$0xff]
      %v398 = vld [vmem:[%s2 + $0xc0] sm:$0xff]
      %v399 = vld [vmem:[%s2 + $0xc8] sm:$0xff]
      %v400 = vld [vmem:[%s2 + $0xd0] sm:$0xff]
      %v401 = vld [vmem:[%s2 + $0xd8] sm:$0xff]
      %v402 = vld [vmem:[%s2 + $0xe0] sm:$0xff]
      %v403 = vld [vmem:[%s2 + $0xe8] sm:$0xff]
      %v404 = vld [vmem:[%s2 + $0xf0] sm:$0xff]
      %v405 = vld [vmem:[%s2 + $0xf8] sm:$0xff]
      %v406 = vld [vmem:[%s2 + $0x100] sm:$0xff]
      %v407 = vld [vmem:[%s2 + $0x108] sm:$0xff]
      %v408 = vld [vmem:[%s2 + $0x110] sm:$0xff]
      %v409 = vld [vmem:[%s2 + $0x118] sm:$0xff]
      %v410 = vld [vmem:[%s2 + $0x120] sm:$0xff]
      %v411 = vld [vmem:[%s2 + $0x128] sm:$0xff]
      %v412 = vld [vmem:[%s2 + $0x130] sm:$0xff]
      %v413 = vld [vmem:[%s2 + $0x138] sm:$0xff]
      %v414 = vld [vmem:[%s2 + $0x140] sm:$0xff]
      %v415 = vld [vmem:[%s2 + $0x148] sm:$0xff]
      %v416 = vld [vmem:[%s2 + $0x150] sm:$0xff]
      %v417 = vld [vmem:[%s2 + $0x158] sm:$0xff]
      %v418 = vld [vmem:[%s2 + $0x160] sm:$0xff]
      %v419 = vld [vmem:[%s2 + $0x168] sm:$0xff]
      %v420 = vld [vmem:[%s2 + $0x170] sm:$0xff]
      %v421 = vld [vmem:[%s2 + $0x178] sm:$0xff]
      %v422 = vld [vmem:[%s2 + $0x180] sm:$0xff]
      %v423 = vld [vmem:[%s2 + $0x188] sm:$0xff]
      %v424 = vld [vmem:[%s2 + $0x190] sm:$0xff]
      %v425 = vld [vmem:[%s2 + $0x198] sm:$0xff]
      %v426 = vld [vmem:[%s2 + $0x1a0] sm:$0xff]
      %v427 = vld [vmem:[%s2 + $0x1a8] sm:$0xff]
      %v428 = vld [vmem:[%s2 + $0x1b0] sm:$0xff]
      %v429 = vld [vmem:[%s2 + $0x1b8] sm:$0xff]
      %v430 = vld [vmem:[%s2 + $0x1c0] sm:$0xff]
      %v431 = vld [vmem:[%s2 + $0x1c8] sm:$0xff]
      %v432 = vld [vmem:[%s2 + $0x1d0] sm:$0xff]
      %v433 = vld [vmem:[%s2 + $0x1d8] sm:$0xff]
      %v434 = vld [vmem:[%s2 + $0x1e0] sm:$0xff]
      %v435 = vld [vmem:[%s2 + $0x1e8] sm:$0xff]
      %v436 = vld [vmem:[%s2 + $0x1f0] sm:$0xff]
      %v437 = vld [vmem:[%s2 + $0x1f8] sm:$0xff]
      %438 = vmatprep.subr.mxu0 %v407
      %439 = vmatpush1.msra.mxu0 %v406
      %440 = vmatprep.subr.mxu0 %v409
      %441 = vmatpush1.msra.mxu0 %v408
      %442 = vmatprep.subr.mxu0 %v411
      %443 = vmatpush1.msra.mxu0 %v410
      %444 = vmatprep.subr.mxu0 %v413
      %445 = vmatpush1.msra.mxu0 %v412
      %446 = vmatprep.subr.mxu0 %v415
      %447 = vmatpush1.msra.mxu0 %v414
      %448 = vmatprep.subr.mxu0 %v417
      %449 = vmatpush1.msra.mxu0 %v416
      %450 = vmatprep.subr.mxu0 %v419
      %451 = vmatpush1.msra.mxu0 %v418
      %452 = vmatprep.subr.mxu0 %v421
      %453 = vmatpush1.msra.mxu0 %v420
      %454 = vmatprep.subr.mxu0 %v423
      %455 = vmatpush1.msra.mxu0 %v422
      %456 = vmatprep.subr.mxu0 %v425
      %457 = vmatpush1.msra.mxu0 %v424
      %458 = vmatprep.subr.mxu0 %v427
      %459 = vmatpush1.msra.mxu0 %v426
      %460 = vmatprep.subr.mxu0 %v429
      %461 = vmatpush1.msra.mxu0 %v428
      %462 = vmatprep.subr.mxu0 %v431
      %463 = vmatpush1.msra.mxu0 %v430
      %464 = vmatprep.subr.mxu0 %v433
      %465 = vmatpush1.msra.mxu0 %v432
      %466 = vmatprep.subr.mxu0 %v435
      %467 = vmatpush1.msra.mxu0 %v434
      %468 = vmatprep.subr.mxu0 %v437
      %469 = vmatpush1.msra.mxu0 %v436
      %470 = vmatprep.subr.mxu0 0.0
      %471 = vmatpush1.msra.mxu0 0.0
      %472 = vmatprep.subr.mxu0 0.0
      %473 = vmatpush1.msra.mxu0 0.0
      %474 = vmatprep.subr.mxu0 0.0
      %475 = vmatpush1.msra.mxu0 0.0
      %476 = vmatprep.subr.mxu0 0.0
      %477 = vmatpush1.msra.mxu0 0.0
      %478 = vmatprep.subr.mxu0 0.0
      %479 = vmatpush1.msra.mxu0 0.0
      %480 = vmatprep.subr.mxu0 0.0
      %481 = vmatpush1.msra.mxu0 0.0
      %482 = vmatprep.subr.mxu0 0.0
      %483 = vmatpush1.msra.mxu0 0.0
      %484 = vmatprep.subr.mxu0 0.0
      %485 = vmatpush1.msra.mxu0 0.0
      %486 = vmatprep.subr.mxu0 0.0
      %487 = vmatpush1.msra.mxu0 0.0
      %488 = vmatprep.subr.mxu0 0.0
      %489 = vmatpush1.msra.mxu0 0.0
      %490 = vmatprep.subr.mxu0 0.0
      %491 = vmatpush1.msra.mxu0 0.0
      %492 = vmatprep.subr.mxu0 0.0
      %493 = vmatpush1.msra.mxu0 0.0
      %494 = vmatprep.subr.mxu0 0.0
      %495 = vmatpush1.msra.mxu0 0.0
      %496 = vmatprep.subr.mxu0 0.0
      %497 = vmatpush1.msra.mxu0 0.0
      %498 = vmatprep.subr.mxu0 0.0
      %499 = vmatpush1.msra.mxu0 0.0
      %500 = vmatprep.subr.mxu0 0.0
      %501 = vmatpush1.msra.mxu0 0.0
      %502 = vmatprep.mubr.f32.mxu0 0.0
      %503 = vmatmul.mubr.f32.gmra.mrb[0].mxu0 %v336
      %v504 = vpop.f32.mrb[0].mxu0
      %v505 = vadd.f32 0.0, %v504
      %v506 = vpop.f32.mrb[0].mxu0
      %v507 = vadd.f32 0.0, %v506
      %508 = vmatprep.mubr.f32.mxu0 0.0
      %509 = vmatmul.mubr.f32.gmra.mrb[0].mxu0 %v341
      %v510 = vpop.f32.mrb[0].mxu0
      %v511 = vadd.f32 0.0, %v510
      %v512 = vpop.f32.mrb[0].mxu0
      %v513 = vadd.f32 0.0, %v512
      %514 = vmatprep.mubr.f32.mxu0 0.0
      %515 = vmatmul.mubr.f32.gmra.mrb[0].mxu0 %v346
      %v516 = vpop.f32.mrb[0].mxu0
      %v517 = vadd.f32 0.0, %v516
      %v518 = vpop.f32.mrb[0].mxu0
      %v519 = vadd.f32 0.0, %v518
      %520 = vmatprep.mubr.f32.mxu0 0.0
      %521 = vmatmul.mubr.f32.gmra.mrb[0].mxu0 %v351
      %v522 = vpop.f32.mrb[0].mxu0
      %v523 = vadd.f32 0.0, %v522
      %v524 = vpop.f32.mrb[0].mxu0
      %v525 = vadd.f32 0.0, %v524
      %526 = vdwg.mxu0
      %527 = vmatprep.subr.mxu0 %v375
      %528 = vmatpush1.msra.mxu0 %v374
      %529 = vmatprep.subr.mxu0 %v377
      %530 = vmatpush1.msra.mxu0 %v376
      %531 = vmatprep.subr.mxu0 %v379
      %532 = vmatpush1.msra.mxu0 %v378
      %533 = vmatprep.subr.mxu0 %v381
      %534 = vmatpush1.msra.mxu0 %v380
      %535 = vmatprep.subr.mxu0 %v383
      %536 = vmatpush1.msra.mxu0 %v382
      %537 = vmatprep.subr.mxu0 %v385
      %538 = vmatpush1.msra.mxu0 %v384
      %539 = vmatprep.subr.mxu0 %v387
      %540 = vmatpush1.msra.mxu0 %v386
      %541 = vmatprep.subr.mxu0 %v389
      %542 = vmatpush1.msra.mxu0 %v388
      %543 = vmatprep.subr.mxu0 %v391
      %544 = vmatpush1.msra.mxu0 %v390
      %545 = vmatprep.subr.mxu0 %v393
      %546 = vmatpush1.msra.mxu0 %v392
      %547 = vmatprep.subr.mxu0 %v395
      %548 = vmatpush1.msra.mxu0 %v394
      %549 = vmatprep.subr.mxu0 %v397
      %550 = vmatpush1.msra.mxu0 %v396
      %551 = vmatprep.subr.mxu0 %v399
      %552 = vmatpush1.msra.mxu0 %v398
      %553 = vmatprep.subr.mxu0 %v401
      %554 = vmatpush1.msra.mxu0 %v400
      %555 = vmatprep.subr.mxu0 %v403
      %556 = vmatpush1.msra.mxu0 %v402
      %557 = vmatprep.subr.mxu0 %v405
      %558 = vmatpush1.msra.mxu0 %v404
      %559 = vmatprep.subr.mxu0 0.0
      %560 = vmatpush1.msra.mxu0 0.0
      %561 = vmatprep.subr.mxu0 0.0
      %562 = vmatpush1.msra.mxu0 0.0
      %563 = vmatprep.subr.mxu0 0.0
      %564 = vmatpush1.msra.mxu0 0.0
      %565 = vmatprep.subr.mxu0 0.0
      %566 = vmatpush1.msra.mxu0 0.0
      %567 = vmatprep.subr.mxu0 0.0
      %568 = vmatpush1.msra.mxu0 0.0
      %569 = vmatprep.subr.mxu0 0.0
      %570 = vmatpush1.msra.mxu0 0.0
      %571 = vmatprep.subr.mxu0 0.0
      %572 = vmatpush1.msra.mxu0 0.0
      %573 = vmatprep.subr.mxu0 0.0
      %574 = vmatpush1.msra.mxu0 0.0
      %575 = vmatprep.subr.mxu0 0.0
      %576 = vmatpush1.msra.mxu0 0.0
      %577 = vmatprep.subr.mxu0 0.0
      %578 = vmatpush1.msra.mxu0 0.0
      %579 = vmatprep.subr.mxu0 0.0
      %580 = vmatpush1.msra.mxu0 0.0
      %581 = vmatprep.subr.mxu0 0.0
      %582 = vmatpush1.msra.mxu0 0.0
      %583 = vmatprep.subr.mxu0 0.0
      %584 = vmatpush1.msra.mxu0 0.0
      %585 = vmatprep.subr.mxu0 0.0
      %586 = vmatpush1.msra.mxu0 0.0
      %587 = vmatprep.subr.mxu0 0.0
      %588 = vmatpush1.msra.mxu0 0.0
      %589 = vmatprep.subr.mxu0 0.0
      %590 = vmatpush1.msra.mxu0 0.0
      %591 = vmatprep.mubr.f32.mxu0 0.0
      %592 = vmatmul.mubr.f32.gmra.mrb[0].mxu0 %v316
      %v593 = vpop.f32.mrb[0].mxu0
      %v594 = vadd.f32 %v505, %v593
      %v595 = vpop.f32.mrb[0].mxu0
      %v596 = vadd.f32 %v507, %v595
      %597 = vmatprep.mubr.f32.mxu0 0.0
      %598 = vmatmul.mubr.f32.gmra.mrb[0].mxu0 %v321
      %v599 = vpop.f32.mrb[0].mxu0
      %v600 = vadd.f32 %v511, %v599
      %v601 = vpop.f32.mrb[0].mxu0
      %v602 = vadd.f32 %v513, %v601
      %603 = vmatprep.mubr.f32.mxu0 0.0
      %604 = vmatmul.mubr.f32.gmra.mrb[0].mxu0 %v326
      %v605 = vpop.f32.mrb[0].mxu0
      %v606 = vadd.f32 %v517, %v605
      %v607 = vpop.f32.mrb[0].mxu0
      %v608 = vadd.f32 %v519, %v607
      %609 = vmatprep.mubr.f32.mxu0 0.0
      %610 = vmatmul.mubr.f32.gmra.mrb[0].mxu0 %v331
      %v611 = vpop.f32.mrb[0].mxu0
      %v612 = vadd.f32 %v523, %v611
      %v613 = vpop.f32.mrb[0].mxu0
      %v614 = vadd.f32 %v525, %v613
      %615 = vdwg.mxu0
      %v616 = vld [vmem:[%s2 + $0x200] sm:$0xff]
      %v617 = vld [vmem:[%s2 + $0x208] sm:$0xff]
      %v618 = vld [vmem:[%s2 + $0x210] sm:$0xff]
      %v619 = vld [vmem:[%s2 + $0x218] sm:$0xff]
      %v620 = vld [vmem:[%s2 + $0x220] sm:$0xff]
      %v621 = vld [vmem:[%s2 + $0x228] sm:$0xff]
      %v622 = vld [vmem:[%s2 + $0x230] sm:$0xff]
      %v623 = vld [vmem:[%s2 + $0x238] sm:$0xff]
      %v624 = vld [vmem:[%s2 + $0x240] sm:$0xff]
      %v625 = vld [vmem:[%s2 + $0x248] sm:$0xff]
      %v626 = vld [vmem:[%s2 + $0x250] sm:$0xff]
      %v627 = vld [vmem:[%s2 + $0x258] sm:$0xff]
      %v628 = vld [vmem:[%s2 + $0x260] sm:$0xff]
      %v629 = vld [vmem:[%s2 + $0x268] sm:$0xff]
      %v630 = vld [vmem:[%s2 + $0x270] sm:$0xff]
      %v631 = vld [vmem:[%s2 + $0x278] sm:$0xff]
      %v632 = vld [vmem:[%s2 + $0x280] sm:$0xff]
      %v633 = vld [vmem:[%s2 + $0x288] sm:$0xff]
      %v634 = vld [vmem:[%s2 + $0x290] sm:$0xff]
      %v635 = vld [vmem:[%s2 + $0x298] sm:$0xff]
      %v636 = vld [vmem:[%s2 + $0x2a0] sm:$0xff]
      %v637 = vld [vmem:[%s2 + $0x2a8] sm:$0xff]
      %v638 = vld [vmem:[%s2 + $0x2b0] sm:$0xff]
      %v639 = vld [vmem:[%s2 + $0x2b8] sm:$0xff]
      %v640 = vld [vmem:[%s2 + $0x2c0] sm:$0xff]
      %v641 = vld [vmem:[%s2 + $0x2c8] sm:$0xff]
      %v642 = vld [vmem:[%s2 + $0x2d0] sm:$0xff]
      %v643 = vld [vmem:[%s2 + $0x2d8] sm:$0xff]
      %v644 = vld [vmem:[%s2 + $0x2e0] sm:$0xff]
      %v645 = vld [vmem:[%s2 + $0x2e8] sm:$0xff]
      %v646 = vld [vmem:[%s2 + $0x2f0] sm:$0xff]
      %v647 = vld [vmem:[%s2 + $0x2f8] sm:$0xff]
      %648 = vmatprep.subr.mxu0 %v617
      %649 = vmatpush1.msra.mxu0 %v616
      %650 = vmatprep.subr.mxu0 %v619
      %651 = vmatpush1.msra.mxu0 %v618
      %652 = vmatprep.subr.mxu0 %v621
      %653 = vmatpush1.msra.mxu0 %v620
      %654 = vmatprep.subr.mxu0 %v623
      %655 = vmatpush1.msra.mxu0 %v622
      %656 = vmatprep.subr.mxu0 %v625
      %657 = vmatpush1.msra.mxu0 %v624
      %658 = vmatprep.subr.mxu0 %v627
      %659 = vmatpush1.msra.mxu0 %v626
      %660 = vmatprep.subr.mxu0 %v629
      %661 = vmatpush1.msra.mxu0 %v628
      %662 = vmatprep.subr.mxu0 %v631
      %663 = vmatpush1.msra.mxu0 %v630
      %664 = vmatprep.subr.mxu0 %v633
      %665 = vmatpush1.msra.mxu0 %v632
      %666 = vmatprep.subr.mxu0 %v635
      %667 = vmatpush1.msra.mxu0 %v634
      %668 = vmatprep.subr.mxu0 %v637
      %669 = vmatpush1.msra.mxu0 %v636
      %670 = vmatprep.subr.mxu0 %v639
      %671 = vmatpush1.msra.mxu0 %v638
      %672 = vmatprep.subr.mxu0 %v641
      %673 = vmatpush1.msra.mxu0 %v640
      %674 = vmatprep.subr.mxu0 %v643
      %675 = vmatpush1.msra.mxu0 %v642
      %676 = vmatprep.subr.mxu0 %v645
      %677 = vmatpush1.msra.mxu0 %v644
      %678 = vmatprep.subr.mxu0 %v647
      %679 = vmatpush1.msra.mxu0 %v646
      %680 = vmatprep.subr.mxu0 0.0
      %681 = vmatpush1.msra.mxu0 0.0
      %682 = vmatprep.subr.mxu0 0.0
      %683 = vmatpush1.msra.mxu0 0.0
      %684 = vmatprep.subr.mxu0 0.0
      %685 = vmatpush1.msra.mxu0 0.0
      %686 = vmatprep.subr.mxu0 0.0
      %687 = vmatpush1.msra.mxu0 0.0
      %688 = vmatprep.subr.mxu0 0.0
      %689 = vmatpush1.msra.mxu0 0.0
      %690 = vmatprep.subr.mxu0 0.0
      %691 = vmatpush1.msra.mxu0 0.0
      %692 = vmatprep.subr.mxu0 0.0
      %693 = vmatpush1.msra.mxu0 0.0
      %694 = vmatprep.subr.mxu0 0.0
      %695 = vmatpush1.msra.mxu0 0.0
      %696 = vmatprep.subr.mxu0 0.0
      %697 = vmatpush1.msra.mxu0 0.0
      %698 = vmatprep.subr.mxu0 0.0
      %699 = vmatpush1.msra.mxu0 0.0
      %700 = vmatprep.subr.mxu0 0.0
      %701 = vmatpush1.msra.mxu0 0.0
      %702 = vmatprep.subr.mxu0 0.0
      %703 = vmatpush1.msra.mxu0 0.0
      %704 = vmatprep.subr.mxu0 0.0
      %705 = vmatpush1.msra.mxu0 0.0
      %706 = vmatprep.subr.mxu0 0.0
      %707 = vmatpush1.msra.mxu0 0.0
      %708 = vmatprep.subr.mxu0 0.0
      %709 = vmatpush1.msra.mxu0 0.0
      %710 = vmatprep.subr.mxu0 0.0
      %711 = vmatpush1.msra.mxu0 0.0
      %712 = vmatprep.mubr.f32.mxu0 0.0
      %713 = vmatmul.mubr.f32.gmra.mrb[0].mxu0 %v356
      %v714 = vpop.f32.mrb[0].mxu0
      %v715 = vadd.f32 0.0, %v714
      %v716 = vpop.f32.mrb[0].mxu0
      %v717 = vadd.f32 0.0, %v716
      %718 = vmatprep.mubr.f32.mxu0 0.0
      %719 = vmatmul.mubr.f32.gmra.mrb[0].mxu0 %v361
      %v720 = vpop.f32.mrb[0].mxu0
      %v721 = vadd.f32 0.0, %v720
      %v722 = vpop.f32.mrb[0].mxu0
      %v723 = vadd.f32 0.0, %v722
      %724 = vmatprep.mubr.f32.mxu0 0.0
      %725 = vmatmul.mubr.f32.gmra.mrb[0].mxu0 %v366
      %v726 = vpop.f32.mrb[0].mxu0
      %v727 = vadd.f32 0.0, %v726
      %v728 = vpop.f32.mrb[0].mxu0
      %v729 = vadd.f32 0.0, %v728
      %730 = vmatprep.mubr.f32.mxu0 0.0
      %731 = vmatmul.mubr.f32.gmra.mrb[0].mxu0 %v371
      %v732 = vpop.f32.mrb[0].mxu0
      %v733 = vadd.f32 0.0, %v732
      %v734 = vpop.f32.mrb[0].mxu0
      %v735 = vadd.f32 0.0, %v734
      %736 = vdwg.mxu0
      %v737 = vadd.f32 %v594, %v715
      %v738 = vadd.f32 %v596, %v717
      %v739 = vadd.f32 %v600, %v721
      %v740 = vadd.f32 %v602, %v723
      %v741 = vadd.f32 %v606, %v727
      %v742 = vadd.f32 %v608, %v729
      %v743 = vadd.f32 %v612, %v733
      %v744 = vadd.f32 %v614, %v735
      %v745 = vld [vmem:[%s3] sm:$0x3]
      %v747 = vlaneseq
      %v748 = vshrl.u32 %v747, 7
      %v749 = vsub.s32 0, %v748
      %v750 = vrot.slane %v745, %v749
      %v751 = vlaneseq
      %v752 = vshrl.u32 %v751, 7
      %v753 = vsub.s32 1, %v752
      %v754 = vrot.slane %v745, %v753
      %v757 = vadd.f32 %v737, %v750
      %v758 = vadd.f32 %v738, %v754
      %v759 = vadd.f32 %v739, %v750
      %v760 = vadd.f32 %v740, %v754
      %v761 = vadd.f32 %v741, %v750
      %v762 = vadd.f32 %v742, %v754
      %v763 = vadd.f32 %v743, %v750
      %v764 = vadd.f32 %v744, %v754
      %765 = vst [vmem:[%s197] sm:$0xff] %v757
      %766 = vst [vmem:[%s197 + $0x8] sm:$0xff] %v758
      %767 = vst [vmem:[%s197 + $0x10] sm:$0xff] %v759
      %768 = vst [vmem:[%s197 + $0x18] sm:$0xff] %v760
      %769 = vst [vmem:[%s197 + $0x20] sm:$0xff] %v761
      %770 = vst [vmem:[%s197 + $0x28] sm:$0xff] %v762
      %771 = vst [vmem:[%s197 + $0x30] sm:$0xff] %v763
      %772 = vst [vmem:[%s197 + $0x38] sm:$0xff] %v764
      %p773 = scmp.lt.s32.totalorder %s15, 1
      %s774 = scalar_select %p773, %s15, 1
      %s775 = smul.addr %s774, 8
      %s776 = smul.addr %s775, 8
      %s777 = scalar_lea.vmem %s4, %s776
      // Predicated region
      $region37: #{upsample_conv_layer.1} parent=35 // pred_check
        %p778 = pneg %p122
      $region38: #{upsample_conv_layer.1} parent=35 // pred_check_branch
        %780 = sbr.rel (%p778) target = $region40
      $region39: #{upsample_conv_layer.1} parent=35 // pred_region
        _
      $region40: #{upsample_conv_layer.1} parent=35 // pred_fallthru
        _
    $region36: #{upsample_conv_layer.1} parent=5 // pred_fallthru
      _
    %p781 = scmp.le.s32.totalorder 2, %s10
    // Predicated region
    $region41: #{upsample_conv_layer.1} parent=5 // pred_check
      %p782 = pneg %p781
    $region42: #{upsample_conv_layer.1} parent=5 // pred_check_branch
      %784 = sbr.rel (%p782) target = $region44
    $region43: #{upsample_conv_layer.1} parent=5 // pred_region
      %s785 = ssub.s32 %s10, 2
      // Predicated region
      $region45: #{upsample_conv_layer.1} parent=43 // pred_check
        %p786 = pneg %p128
      $region46: #{upsample_conv_layer.1} parent=43 // pred_check_branch
        %788 = sbr.rel (%p786) target = $region48
      $region47: #{upsample_conv_layer.1} parent=43 // pred_region
        %p789 = scmp.lt.s32.totalorder %s16, 1
        %s790 = scalar_select %p789, %s16, 1
        %s791 = smul.addr %s790, 8
        %s792 = smul.addr %s791, 8
        %s793 = scalar_lea.vmem %s4, %s792
      $region48: #{upsample_conv_layer.1} parent=43 // pred_fallthru
        _
    $region44: #{upsample_conv_layer.1} parent=5 // pred_fallthru
      _
  $region6: #{upsample_conv_layer.1} parent=0 // loop_footer
    %s14 = sadd.s32 1, %s10
  $region7: #{upsample_conv_layer.1} parent=0 // loop_footer_branch
    %9 = sbr.rel target = $region3
  $region8: #{upsample_conv_layer.1} parent=0 // loop_exit
    _

</llo_original>
